<compile_context>
chip_gen: v6e
topology: v6e:2x2x1
jax: 0.10.0
libtpu: 0.0.40
codegen_flags: <defaults>
</compile_context>

<pallas_src>
import numpy as np
import jax
import jax.numpy as jnp
from jax.experimental import pallas as pl
from jax.experimental.pallas import tpu as pltpu


# --------------------------------------------------------------------------
# AugMix augmentation space (mirrors AugMix._augmentation_space, all_ops=True)
# --------------------------------------------------------------------------
_PARAMETER_MAX = 10


def _augmentation_space(num_bins, image_size):
    return {
        "ShearX": (np.linspace(0.0, 0.3, num_bins), True),
        "ShearY": (np.linspace(0.0, 0.3, num_bins), True),
        "TranslateX": (np.linspace(0.0, image_size[1] / 3.0, num_bins), True),
        "TranslateY": (np.linspace(0.0, image_size[0] / 3.0, num_bins), True),
        "Rotate": (np.linspace(0.0, 30.0, num_bins), True),
        "Posterize": (4 - np.round(np.arange(num_bins) / ((num_bins - 1) / 4.0)).astype(np.int32), False),
        "Solarize": (np.linspace(255.0, 0.0, num_bins), False),
        "AutoContrast": (np.array(0.0), False),
        "Equalize": (np.array(0.0), False),
        "Brightness": (np.linspace(0.0, 0.9, num_bins), True),
        "Color": (np.linspace(0.0, 0.9, num_bins), True),
        "Contrast": (np.linspace(0.0, 0.9, num_bins), True),
        "Sharpness": (np.linspace(0.0, 0.9, num_bins), True),
    }


# Ops implementable as pure per-pixel (elementwise) math inside the kernel.
# TODO(synk): geometric ops (ShearX/Y, TranslateX/Y, Rotate) and histogram /
# cross-pixel ops (AutoContrast, Equalize, Color, Contrast, Sharpness) have no
# clean elementwise Pallas equivalent; op sampling is restricted to the
# elementwise subset below.
_SUPPORTED_OPS = ("Posterize", "Solarize", "Brightness")


def build_chains(severity=3, mixture_width=3, chain_depth=-1,
                 image_size=(16, 16), seed=0):
    """Deterministically sample the augmentation chains (host-side, like PyTorch)."""
    op_meta = _augmentation_space(_PARAMETER_MAX, image_size)
    rng = np.random.RandomState(seed)
    chains = []
    for _ in range(mixture_width):
        depth = chain_depth if chain_depth > 0 else int(rng.randint(1, 4))
        chain = []
        for _ in range(depth):
            op_name = _SUPPORTED_OPS[rng.randint(len(_SUPPORTED_OPS))]
            magnitudes, signed = op_meta[op_name]
            magnitude = float(magnitudes[rng.randint(severity)]) if magnitudes.ndim > 0 else 0.0
            if signed and rng.randint(2):
                magnitude *= -1.0
            chain.append((op_name, magnitude))
        chains.append(tuple(chain))
    return tuple(chains)


# --------------------------------------------------------------------------
# Elementwise augmentation ops (uint8 semantics, carried in float32).
# Each op re-quantizes to integral values (truncation) like torchvision does
# when it writes back to a uint8 tensor after every op.
# --------------------------------------------------------------------------
def _apply_op_jnp(x, op_name, magnitude):
    if op_name == "Brightness":
        # F.adjust_brightness on uint8: clamp(factor*img, 0, 255), truncate to uint8.
        return jnp.floor(jnp.clip((1.0 + magnitude) * x, 0.0, 255.0))
    if op_name == "Solarize":
        # invert pixels >= threshold (integer-exact)
        return jnp.where(x >= magnitude, 255.0 - x, x)
    if op_name == "Posterize":
        # keep `bits` most-significant bits; x is integral and q is a power of 2,
        # so multiply-by-reciprocal + floor is exact (no VALU divide).
        bits = int(magnitude)
        q = float(2 ** (8 - bits))
        return jnp.floor(x * (1.0 / q)) * q
    if op_name == "Identity":
        return x
    raise ValueError(f"unsupported op {op_name}")


# --------------------------------------------------------------------------
# Pallas kernel: u8 load -> augmentation chains -> Dirichlet mix -> u8 store
# --------------------------------------------------------------------------
def make_augmix_kernel(chains, w_stride):
    def kernel(w_ref, x_ref, o_ref):
        # w_ref : (N * (1 + mixture_width),) float32 mixing weights in SMEM
        # x_ref : (tile_r, 128) uint8 image tile (batch axis squeezed)
        # o_ref : (tile_r, 128) uint8 output tile
        b = pl.program_id(0)
        base = b * w_stride
        # u8 -> i32 -> f32 (safe lowering path), values in [0, 255]
        x = x_ref[...].astype(jnp.int32).astype(jnp.float32)

        mix = w_ref[base] * x                       # m[:,0] * batch  (scalar * vector)
        for i, chain in enumerate(chains):          # static: unrolled at trace time
            aug = x
            for (op_name, mag) in chain:
                aug = _apply_op_jnp(aug, op_name, mag)
            mix = mix + w_ref[base + 1 + i] * aug   # combined_weights[:, i] * aug

        # mix.view(orig_dims).to(dtype=uint8): clamp then truncate (like torch .to()).
        o_ref[...] = jnp.clip(mix, 0.0, 255.0).astype(jnp.int32).astype(jnp.uint8)
    return kernel


def _choose_tile_r(R, max_rows=4096):
    """Pick a row-tile: full extent if small, else the largest divisor of R that
    is a multiple of 32 (uint8 sublane tile) and <= max_rows (~512 KiB u8/block)."""
    if R <= max_rows:
        return R
    start = max_rows - (max_rows % 32)
    for t in range(start, 0, -32):
        if R % t == 0:
            return t
    return R  # no nice divisor: fall back to full extent


def augmix_pallas(img_u8, weights, chains):
    """img_u8: (N, C, H, W) uint8; weights: (N, 1 + mixture_width) float32."""
    N = img_u8.shape[0]
    F = int(np.prod(img_u8.shape[1:]))
    L = 128
    Fp = ((F + L - 1) // L) * L                     # pad per-image flat length to lane width

    x = img_u8.reshape(N, F)
    if Fp != F:
        x = jnp.pad(x, ((0, 0), (0, Fp - F)))       # elementwise ops -> padding is harmless
    R = Fp // L
    tile_r = _choose_tile_r(R)
    x = x.reshape(N, R, L)                          # lane-dense uint8 slab per image

    w_stride = weights.shape[1]
    w_flat = weights.reshape(-1).astype(jnp.float32)  # 1-D SMEM: minimal padding

    out = pl.pallas_call(
        make_augmix_kernel(chains, w_stride),
        out_shape=jax.ShapeDtypeStruct((N, R, L), jnp.uint8),
        grid_spec=pltpu.PrefetchScalarGridSpec(
            num_scalar_prefetch=1,                  # weights -> SMEM
            grid=(N, R // tile_r),
            in_specs=[
                pl.BlockSpec((None, tile_r, L), lambda b, r, w: (b, r, 0)),
            ],
            out_specs=pl.BlockSpec((None, tile_r, L), lambda b, r, w: (b, r, 0)),
        ),
        compiler_params=pltpu.CompilerParams(
            dimension_semantics=("parallel", "parallel"),
            vmem_limit_bytes=32 * 1024 * 1024,
        ),
    )(w_flat, x)

    out = out.reshape(N, Fp)
    if Fp != F:
        out = out[:, :F]
    return out.reshape(img_u8.shape)


# --------------------------------------------------------------------------
# Pure-JAX reference (same math, whole array at once) for a sanity check.
# --------------------------------------------------------------------------
def augmix_reference(img_u8, weights, chains):
    x = img_u8.astype(jnp.float32)
    bshape = (img_u8.shape[0],) + (1,) * (img_u8.ndim - 1)
    mix = weights[:, 0].reshape(bshape) * x
    for i, chain in enumerate(chains):
        aug = x
        for (op_name, mag) in chain:
            aug = _apply_op_jnp(aug, op_name, mag)
        mix = mix + weights[:, i + 1].reshape(bshape) * aug
    return jnp.clip(mix, 0.0, 255.0).astype(jnp.int32).astype(jnp.uint8)


# --------------------------------------------------------------------------
if __name__ == "__main__":
    N, C, H, W = 2, 3, 16, 16
    severity, mixture_width, chain_depth, alpha = 3, 3, -1, 1.0

    key = jax.random.PRNGKey(0)
    k_img, k_m, k_cw = jax.random.split(key, 3)

    img = jax.random.randint(k_img, (N, C, H, W), 0, 256, dtype=jnp.int32).astype(jnp.uint8)

    # Dirichlet mixing weights (as in AugMix.forward): m ~ Dir([alpha, alpha]),
    # combined_weights ~ Dir([alpha]*width) * m[:, 1]
    m = jax.random.dirichlet(k_m, jnp.full((2,), alpha, jnp.float32), shape=(N,))
    cw = jax.random.dirichlet(k_cw, jnp.full((mixture_width,), alpha, jnp.float32),
                              shape=(N,)) * m[:, 1:2]
    weights = jnp.concatenate([m[:, 0:1], cw], axis=1).astype(jnp.float32)  # (N, 1+width)

    chains = build_chains(severity=severity, mixture_width=mixture_width,
                          chain_depth=chain_depth, image_size=(H, W), seed=0)

    out = augmix_pallas(img, weights, chains)
    out = jax.block_until_ready(out)
    assert out.shape == img.shape and out.dtype == img.dtype

    ref = jax.block_until_ready(augmix_reference(img, weights, chains))
    diff = np.abs(np.asarray(out).astype(np.int32) - np.asarray(ref).astype(np.int32))
    assert diff.max() <= 1, f"max abs diff vs reference = {diff.max()}"

    print("KERNEL_OK")
</pallas_src>

<mosaic_0001>
module attributes {stable_mosaic.version = 11 : i64} {
  func.func @kernel(%arg0: i32, %arg1: i32, %arg2: memref<8xf32, #tpu.memory_space<smem>>, %arg3: memref<1x6x128xi8, #tpu.memory_space<vmem>>, %arg4: memref<1x6x128xi8, #tpu.memory_space<vmem>>) attributes {dimension_semantics = [#tpu.dimension_semantics<parallel>, #tpu.dimension_semantics<parallel>], iteration_bounds = array<i64: 2, 1>, scalar_prefetch = 1 : i64, scratch_operands = 0 : i64, tpu.core_type = #tpu.core_type<tc>, window_params = [{transform_indices = @transform_0, window_bounds = array<i64: 1, 6, 128>}, {transform_indices = @transform_1, window_bounds = array<i64: 1, 6, 128>}]} {
    %c4_i32 = arith.constant 4 : i32
    %0 = arith.muli %arg0, %c4_i32 : i32
    %c0 = arith.constant 0 : index
    %c0_0 = arith.constant 0 : index
    %c0_1 = arith.constant 0 : index
    %1 = vector.load %arg3[%c0, %c0_0, %c0_1] : memref<1x6x128xi8, #tpu.memory_space<vmem>>, vector<1x6x128xi8>
    %2 = vector.shape_cast %1 : vector<1x6x128xi8> to vector<6x128xi8>
    %3 = arith.extui %2 : vector<6x128xi8> to vector<6x128xi32>
    %4 = arith.sitofp %3 : vector<6x128xi32> to vector<6x128xf32>
    %5 = arith.index_cast %0 : i32 to index
    %6 = memref.load %arg2[%5] : memref<8xf32, #tpu.memory_space<smem>>
    %7 = vector.broadcast %6 : f32 to vector<6x128xf32>
    %8 = arith.mulf %7, %4 : vector<6x128xf32>
    %cst = arith.constant 2.550000e+02 : f32
    %9 = vector.broadcast %cst : f32 to vector<6x128xf32>
    %10 = arith.cmpf oge, %4, %9 : vector<6x128xf32>
    %cst_2 = arith.constant 2.550000e+02 : f32
    %11 = vector.broadcast %cst_2 : f32 to vector<6x128xf32>
    %12 = arith.subf %11, %4 : vector<6x128xf32>
    %13 = arith.select %10, %12, %4 : vector<6x128xi1>, vector<6x128xf32>
    %c1_i32 = arith.constant 1 : i32
    %14 = arith.addi %0, %c1_i32 : i32
    %c0_i32 = arith.constant 0 : i32
    %15 = arith.addi %14, %c0_i32 : i32
    %16 = arith.index_cast %15 : i32 to index
    %17 = memref.load %arg2[%16] : memref<8xf32, #tpu.memory_space<smem>>
    %18 = vector.broadcast %17 : f32 to vector<6x128xf32>
    %19 = arith.mulf %18, %13 : vector<6x128xf32>
    %20 = arith.addf %8, %19 : vector<6x128xf32>
    %cst_3 = arith.constant 198.333328 : f32
    %21 = vector.broadcast %cst_3 : f32 to vector<6x128xf32>
    %22 = arith.cmpf oge, %4, %21 : vector<6x128xf32>
    %cst_4 = arith.constant 2.550000e+02 : f32
    %23 = vector.broadcast %cst_4 : f32 to vector<6x128xf32>
    %24 = arith.subf %23, %4 : vector<6x128xf32>
    %25 = arith.select %22, %24, %4 : vector<6x128xi1>, vector<6x128xf32>
    %cst_5 = arith.constant 3.125000e-02 : f32
    %26 = vector.broadcast %cst_5 : f32 to vector<6x128xf32>
    %27 = arith.mulf %25, %26 : vector<6x128xf32>
    %28 = math.floor %27 : vector<6x128xf32>
    %cst_6 = arith.constant 3.200000e+01 : f32
    %29 = vector.broadcast %cst_6 : f32 to vector<6x128xf32>
    %30 = arith.mulf %28, %29 : vector<6x128xf32>
    %c1_i32_7 = arith.constant 1 : i32
    %31 = arith.addi %0, %c1_i32_7 : i32
    %c1_i32_8 = arith.constant 1 : i32
    %32 = arith.addi %31, %c1_i32_8 : i32
    %33 = arith.index_cast %32 : i32 to index
    %34 = memref.load %arg2[%33] : memref<8xf32, #tpu.memory_space<smem>>
    %35 = vector.broadcast %34 : f32 to vector<6x128xf32>
    %36 = arith.mulf %35, %30 : vector<6x128xf32>
    %37 = arith.addf %20, %36 : vector<6x128xf32>
    %cst_9 = arith.constant 6.250000e-02 : f32
    %38 = vector.broadcast %cst_9 : f32 to vector<6x128xf32>
    %39 = arith.mulf %4, %38 : vector<6x128xf32>
    %40 = math.floor %39 : vector<6x128xf32>
    %cst_10 = arith.constant 1.600000e+01 : f32
    %41 = vector.broadcast %cst_10 : f32 to vector<6x128xf32>
    %42 = arith.mulf %40, %41 : vector<6x128xf32>
    %c1_i32_11 = arith.constant 1 : i32
    %43 = arith.addi %0, %c1_i32_11 : i32
    %c2_i32 = arith.constant 2 : i32
    %44 = arith.addi %43, %c2_i32 : i32
    %45 = arith.index_cast %44 : i32 to index
    %46 = memref.load %arg2[%45] : memref<8xf32, #tpu.memory_space<smem>>
    %47 = vector.broadcast %46 : f32 to vector<6x128xf32>
    %48 = arith.mulf %47, %42 : vector<6x128xf32>
    %49 = arith.addf %37, %48 : vector<6x128xf32>
    %cst_12 = arith.constant 0.000000e+00 : f32
    %cst_13 = arith.constant 2.550000e+02 : f32
    %50 = vector.broadcast %cst_12 : f32 to vector<6x128xf32>
    %51 = arith.maximumf %50, %49 : vector<6x128xf32>
    %52 = vector.broadcast %cst_13 : f32 to vector<6x128xf32>
    %53 = arith.minimumf %52, %51 : vector<6x128xf32>
    %54 = arith.fptosi %53 : vector<6x128xf32> to vector<6x128xi32>
    %55 = arith.trunci %54 : vector<6x128xi32> to vector<6x128xi8>
    %c0_14 = arith.constant 0 : index
    %c0_15 = arith.constant 0 : index
    %c0_16 = arith.constant 0 : index
    %56 = vector.load %arg4[%c0_14, %c0_15, %c0_16] : memref<1x6x128xi8, #tpu.memory_space<vmem>>, vector<1x6x128xi8>
    %57 = vector.shape_cast %56 : vector<1x6x128xi8> to vector<6x128xi8>
    %58 = vector.shape_cast %55 : vector<6x128xi8> to vector<1x6x128xi8>
    tpu.vector_store %arg4[%c0_14, %c0_15, %c0_16], %58 {strides = array<i32>} : memref<1x6x128xi8, #tpu.memory_space<vmem>>, vector<1x6x128xi8>,
    return
  }
  func.func @transform_0(%arg0: i32, %arg1: i32, %arg2: memref<8xf32, #tpu.memory_space<smem>>) -> (i32, i32, i32) {
    %c0_i32 = arith.constant 0 : i32
    %c0_i32_0 = arith.constant 0 : i32
    return %arg0, %arg1, %c0_i32 : i32, i32, i32
  }
  func.func @transform_1(%arg0: i32, %arg1: i32, %arg2: memref<8xf32, #tpu.memory_space<smem>>) -> (i32, i32, i32) {
    %c0_i32 = arith.constant 0 : i32
    %c0_i32_0 = arith.constant 0 : i32
    return %arg0, %arg1, %c0_i32 : i32, i32, i32
  }
}

</mosaic_0001>

<llo_original>
// kernel: tpu_custom_call.1
$region0: #{tpu_custom_call.1}
  #allocation0 [shape = 'u32[]', space=smem, size = 0x4, offset = 0x4, fixed_abs, tag = 'smem constant byte address 0x4 - core index']
  #allocation1 [shape = 'u32[144,128]{1,0:T(1,128)}', space=vmem, size = 0x12000, scoped, tag = 'internal scratch']
  #allocation2 [shape = 's32[1]{0}', space=sflag, size = 0x4, scoped, tag = 'scoped memory for tpu_custom_call.1']
  #allocation3 [shape = 'u8[512]{0}', space=smem, size = 0x200, scoped, tag = 'prefetched SMEM operand 0']
  %s0 = inlined_call_operand.hbm [shape: f32[8], index: 0, kind: input, shape index: {}]
  %s1 = inlined_call_operand.hbm [shape: u8[2,6,128], index: 1, kind: input, shape index: {}]
  %s2 = inlined_call_operand.hbm [shape: u8[2,6,128], index: 2, kind: output, shape index: {}]
  %s3 = sld [smem:[#allocation0]]
  $region41: #{tpu_custom_call.1} parent=0
    _
  %s5 = ssub.s32 1, %s3
  %s6 = scalar_select 0, %s5, %s3
  %8 = dma.hbm_to_smem %s0, 16, [#allocation3], [#allocation2]
  %9 = dma.done [#allocation2], 16
  %10 = sfence
  $region1: #{tpu_custom_call.1} parent=0
    #allocation4 [shape = 'u8[2048]{0}', space=vmem, size = 0x800, scoped, tag = 'input window, operand 1']
    #allocation5 [shape = 's32[2]{0}', space=sflag, size = 0x8, scoped, tag = 'scoped memory for tpu_custom_call.1']
    #allocation6 [shape = 's32[2]{0}', space=sflag, size = 0x8, scoped, tag = 'scoped memory for tpu_custom_call.1']
    #allocation7 [shape = 'u8[2048]{0}', space=vmem, size = 0x800, scoped, tag = 'output window, operand 0']
    %11 = vsyncpa [#allocation5], 0
    %s12 = scalar_lea.sflag [#allocation5], 1
    %13 = vsyncpa %s12, 0
    %14 = vsyncpa [#allocation6], 0
    %s15 = scalar_lea.sflag [#allocation6], 1
    %16 = vsyncpa %s15, 0
    loop: start=0, step=1, limit=4
    $region2: #{tpu_custom_call.1} parent=1 // loop_pre_header
      _
    $region3: #{tpu_custom_call.1} parent=1 // loop_header
      %s18 = sphi 0, %s22
      %p19 = scmp.ge.s32.totalorder %s18, 4
      %s25 = sphi 0, %s37
      %s26 = sphi 0, %s33
      %s27 = sphi 0, %s25
      %s28 = sphi 0, %s26
      %s29 = sphi 0, %s27
      %s30 = sphi 0, %s28
      %s42 = sphi 0, %s44
      %s45 = sphi 0, %s42
      %s46 = sphi 0, %s45
      %s62 = sphi 0, %s46
      %s70 = sphi 0, %s72
      %s73 = sphi 0, %s70
      %s74 = sphi 0, %s73
      %s90 = sphi 0, %s74
    $region4: #{tpu_custom_call.1} parent=1 // loop_header_branch
      %21 = sbr.rel (%p19) target = $region8
    $region5: #{tpu_custom_call.1} parent=1 // loop_body
      %s23 = ssub.s32 %s18, 1
      %s24 = ssub.s32 %s18, 2
      %s31 = sadd.s32 1, %s26
      %p32 = scmp.ge.s32.totalorder %s31, 1
      %s33 = scalar_select %p32, 0, %s31
      %s34 = sadd.s32 1, %s25
      %s35 = scalar_select %p32, %s34, %s25
      %p36 = scmp.ge.s32.totalorder %s35, 2
      %s37 = scalar_select %p36, 0, %s35
      %s38 = ssub.s32 %s25, %s37
      %s39 = ssub.s32 %s26, %s33
      %s40 = sor.u32 %s38, %s39
      %p41 = scmp.eq.s32.totalorder %s40, 0
      %s43 = sadd.s32 %s42, 1
      %s44 = scalar_select %p41, %s42, %s43
      %p47 = pneg %p41
      %p48 = scmp.eq.s32.totalorder %s18, 1
      %p49 = por %p47, %p48
      %p50 = scmp.ne.s32.totalorder %s42, %s45
      %p51 = scmp.eq.s32.totalorder %s18, 0
      %p52 = por %p50, %p51
      %p53 = scmp.ne.s32.totalorder %s42, %s45
      %p54 = scmp.eq.s32.totalorder %s23, 1
      %p55 = por %p53, %p54
      %p56 = scmp.ne.s32.totalorder %s45, %s46
      %p57 = scmp.eq.s32.totalorder %s23, 0
      %p58 = por %p56, %p57
      %p59 = scmp.ne.s32.totalorder %s45, %s46
      %p60 = scmp.eq.s32.totalorder %s24, 1
      %p61 = por %p59, %p60
      %p63 = scmp.ne.s32.totalorder %s46, %s62
      %p64 = scmp.eq.s32.totalorder %s24, 0
      %p65 = por %p63, %p64
      %s66 = ssub.s32 %s25, %s37
      %s67 = ssub.s32 %s26, %s33
      %s68 = sor.u32 %s66, %s67
      %p69 = scmp.eq.s32.totalorder %s68, 0
      %s71 = sadd.s32 %s70, 1
      %s72 = scalar_select %p69, %s70, %s71
      %p75 = pneg %p69
      %p76 = scmp.eq.s32.totalorder %s18, 1
      %p77 = por %p75, %p76
      %p78 = scmp.ne.s32.totalorder %s70, %s73
      %p79 = scmp.eq.s32.totalorder %s18, 0
      %p80 = por %p78, %p79
      %p81 = scmp.ne.s32.totalorder %s70, %s73
      %p82 = scmp.eq.s32.totalorder %s23, 1
      %p83 = por %p81, %p82
      %p84 = scmp.ne.s32.totalorder %s73, %s74
      %p85 = scmp.eq.s32.totalorder %s23, 0
      %p86 = por %p84, %p85
      %p87 = scmp.ne.s32.totalorder %s73, %s74
      %p88 = scmp.eq.s32.totalorder %s24, 1
      %p89 = por %p87, %p88
      %p91 = scmp.ne.s32.totalorder %s74, %s90
      %p92 = scmp.eq.s32.totalorder %s24, 0
      %p93 = por %p91, %p92
      %p94 = scmp.le.s32.totalorder 1, %s18
      %p95 = scmp.lt.s32.totalorder %s18, 3
      %p96 = pnand %p94, %p95
      %p97 = pneg %p96
      // Predicated region
      $region9: #{tpu_custom_call.1} parent=5 // pred_check
        _
      $region10: #{tpu_custom_call.1} parent=5 // pred_check_branch
        %99 = sbr.rel (%p96) target = $region12
      $region11: #{tpu_custom_call.1} parent=5 // pred_region
        %s100 = ssub.s32 %s18, 1
      $region12: #{tpu_custom_call.1} parent=5 // pred_fallthru
        _
      %p101 = scmp.lt.s32.totalorder %s18, 2
      // Predicated region
      $region13: #{tpu_custom_call.1} parent=5 // pred_check
        %p102 = pneg %p101
      $region14: #{tpu_custom_call.1} parent=5 // pred_check_branch
        %104 = sbr.rel (%p102) target = $region16
      $region15: #{tpu_custom_call.1} parent=5 // pred_region
        // Predicated region
        $region17: #{tpu_custom_call.1} parent=15 // pred_check
          %p105 = pneg %p52
        $region18: #{tpu_custom_call.1} parent=15 // pred_check_branch
          %107 = sbr.rel (%p105) target = $region20
        $region19: #{tpu_custom_call.1} parent=15 // pred_region
          %s108 = sand.u32 %s42, 1
          %s109 = scalar_lea.sflag [#allocation5], %s108
          %s110 = sand.u32 %s42, 1
          %s111 = smul.addr %s110, 2
          %s112 = scalar_lea.vmem [#allocation4], %s111
          %s114 = ssub.s32 32, 32
          %115 = vsyncadd %s109, %s114
          %s116 = sadd.s32 %s26, %s25
          %s117 = smul.addr %s116, 32
          %s118 = scalar_lea.hbm %s1, %s117
          %s120 = sshll.u32 %s112, 4
          %s121 = int_to_ptr.vmem [resolvable:$true] %s120
          %123 = dma.hbm_to_vmem [thread:$0]  %s118, 32, %s121, %s109
        $region20: #{tpu_custom_call.1} parent=15 // pred_fallthru
          _
      $region16: #{tpu_custom_call.1} parent=5 // pred_fallthru
        _
      %p124 = scmp.le.s32.totalorder 1, %s18
      %p125 = scmp.lt.s32.totalorder %s18, 3
      %p126 = pnand %p124, %p125
      %p127 = pneg %p126
      // Predicated region
      $region21: #{tpu_custom_call.1} parent=5 // pred_check
        _
      $region22: #{tpu_custom_call.1} parent=5 // pred_check_branch
        %129 = sbr.rel (%p126) target = $region24
      $region23: #{tpu_custom_call.1} parent=5 // pred_region
        %s130 = ssub.s32 %s18, 1
        %s131 = sand.u32 %s45, 1
        %s132 = scalar_lea.sflag [#allocation5], %s131
        %s133 = sand.u32 %s45, 1
        %s134 = smul.addr %s133, 2
        %s135 = scalar_lea.vmem [#allocation4], %s134
        // Predicated region
        $region25: #{tpu_custom_call.1} parent=23 // pred_check
          %p136 = pneg %p58
        $region26: #{tpu_custom_call.1} parent=23 // pred_check_branch
          %138 = sbr.rel (%p136) target = $region28
        $region27: #{tpu_custom_call.1} parent=23 // pred_region
          %139 = dma.done %s132, 32
        $region28: #{tpu_custom_call.1} parent=23 // pred_fallthru
          _
        %s140 = sand.u32 %s45, 1
        %s141 = scalar_lea.sflag [#allocation5], %s140
        %s142 = sand.u32 %s45, 1
        %s143 = smul.addr %s142, 2
        %s144 = scalar_lea.vmem [#allocation4], %s143
        %p145 = pneg %p58
        %p146 = pneg %p55
        %p147 = pneg %p86
        %p148 = pneg %p83
        %s149 = sand.u32 %s73, 1
        %s150 = scalar_lea.sflag [#allocation6], %s149
        %s151 = sand.u32 %s73, 1
        %s152 = smul.addr %s151, 2
        %s153 = scalar_lea.vmem [#allocation7], %s152
        %s154 = smul.u32 %s27, 4
        %v155 = vld [vmem:[%s135] sm:$0x3]
        %v156 = vunpack.c.0.s8 %v155
        %v157 = vand.u32 %v156, 255
        %v158 = vcvt.s32.f32 %v157
        %s159 = sld [smem:[#allocation3 + %s154]]
        %v160 = vstv %s159
        %v161 = vmul.f32 %v160, %v158
        %vm162 = vcmp.ge.f32.partialorder %v158, 255.0
        %v163 = vsub.f32 255.0, %v158
        %v164 = vsel %vm162, %v163, %v158
        %s165 = sadd.s32 %s154, 1
        %s166 = sld [smem:[#allocation3 + %s165]]
        %v167 = vstv %s166
        %v168 = vmul.f32 %v167, %v164
        %v169 = vadd.f32 %v161, %v168
        %vm170 = vcmp.ge.f32.partialorder %v158, 198.33333
        %v171 = vsel %vm170, %v163, %v158
        %v172 = vmul.f32 %v171, 0.03125
        %v173 = vfloor.f32 %v172
        %v174 = vmul.f32 %v173, 32.0
        %s175 = sadd.s32 %s154, 2
        %s176 = sld [smem:[#allocation3 + %s175]]
        %v177 = vstv %s176
        %v178 = vmul.f32 %v177, %v174
        %v179 = vadd.f32 %v169, %v178
        %v180 = vmul.f32 %v158, 0.0625
        %v181 = vfloor.f32 %v180
        %v182 = vmul.f32 %v181, 16.0
        %s183 = sadd.s32 %s154, 3
        %s184 = sld [smem:[#allocation3 + %s183]]
        %v185 = vstv %s184
        %v186 = vmul.f32 %v185, %v182
        %v187 = vadd.f32 %v179, %v186
        %v188 = vmax.f32 %v187, 0.0
        %v189 = vmin.f32 %v188, 255.0
        %v190 = vcvt.f32.s32.to.zero.pseudo %v189
        %v191 = vpack.c.b16 %v190, %v190
        %v192 = vpack.c.b8 %v191, %v191
        %vm193 = vcmask 1041408
        %vm194 = vsmask.f32 1280
        %vm195 = vmand %vm193, %vm194
        %v196 = vld [vmem:[%s153] sm:$0x3]
        %v197 = vsel %vm195, %v192, %v196
        %198 = vst [vmem:[%s153] sm:$0x3] %v197
        %s199 = sand.u32 %s73, 1
        %s200 = scalar_lea.sflag [#allocation6], %s199
        %s201 = sand.u32 %s73, 1
        %s202 = smul.addr %s201, 2
        %s203 = scalar_lea.vmem [#allocation7], %s202
        // Predicated region
        $region29: #{tpu_custom_call.1} parent=23 // pred_check
          %p204 = pneg %p83
        $region30: #{tpu_custom_call.1} parent=23 // pred_check_branch
          %206 = sbr.rel (%p204) target = $region32
        $region31: #{tpu_custom_call.1} parent=23 // pred_region
          %s208 = ssub.s32 32, 32
          %209 = vsyncadd %s200, %s208
          %s210 = sadd.s32 %s28, %s27
          %s211 = smul.addr %s210, 32
          %s212 = scalar_lea.hbm %s2, %s211
          %s214 = sshll.u32 %s203, 4
          %s215 = int_to_ptr.vmem [resolvable:$true] %s214
          %217 = dma.vmem_to_hbm [thread:$0]  %s215, 32, %s212, %s200
        $region32: #{tpu_custom_call.1} parent=23 // pred_fallthru
          _
      $region24: #{tpu_custom_call.1} parent=5 // pred_fallthru
        _
      %p218 = scmp.le.s32.totalorder 2, %s18
      // Predicated region
      $region33: #{tpu_custom_call.1} parent=5 // pred_check
        %p219 = pneg %p218
      $region34: #{tpu_custom_call.1} parent=5 // pred_check_branch
        %221 = sbr.rel (%p219) target = $region36
      $region35: #{tpu_custom_call.1} parent=5 // pred_region
        %s222 = ssub.s32 %s18, 2
        // Predicated region
        $region37: #{tpu_custom_call.1} parent=35 // pred_check
          %p223 = pneg %p89
        $region38: #{tpu_custom_call.1} parent=35 // pred_check_branch
          %225 = sbr.rel (%p223) target = $region40
        $region39: #{tpu_custom_call.1} parent=35 // pred_region
          %s226 = sand.u32 %s74, 1
          %s227 = scalar_lea.sflag [#allocation6], %s226
          %s228 = sand.u32 %s74, 1
          %s229 = smul.addr %s228, 2
          %s230 = scalar_lea.vmem [#allocation7], %s229
          %231 = dma.done %s227, 32
        $region40: #{tpu_custom_call.1} parent=35 // pred_fallthru
          _
      $region36: #{tpu_custom_call.1} parent=5 // pred_fallthru
        _
    $region6: #{tpu_custom_call.1} parent=1 // loop_footer
      %s22 = sadd.s32 1, %s18
    $region7: #{tpu_custom_call.1} parent=1 // loop_footer_branch
      %17 = sbr.rel target = $region3
    $region8: #{tpu_custom_call.1} parent=1 // loop_exit
      _
    %232 = vsyncpa [#allocation5], 1
    %s233 = scalar_lea.sflag [#allocation5], 1
    %234 = vsyncpa %s233, 1
    %235 = vsyncpa [#allocation6], 1
    %s236 = scalar_lea.sflag [#allocation6], 1
    %237 = vsyncpa %s236, 1

</llo_original>
